<compile_context>
chip_gen: v5e
topology: v5e:2x2
jax: 0.10.0
libtpu: 0.0.40
codegen_flags: <defaults>
</compile_context>

<pallas_src>
import functools

import jax
import jax.numpy as jnp
from jax.experimental import pallas as pl
from jax.experimental.pallas import tpu as pltpu


def _round_up(x, m):
    return ((x + m - 1) // m) * m


def _vmem_budget_bytes():
    """Generation-aware VMEM limit with headroom (compiler scratch, 2nd DMA buf)."""
    cap = 64 * 1024 * 1024  # conservative fallback (v7x per-TC VMEM)
    try:
        cap = int(pltpu.get_tpu_info().vmem_capacity_bytes)
    except Exception:
        pass
    # 0.75 * capacity: ~48 MiB on v7x (64 MiB), ~96 MiB on v5e/v6e (128 MiB).
    return max(32 * 1024 * 1024, int(cap * 0.75))


def _custom_loss_kernel(logits_ref, aux_ref, out_ref, *,
                        batch, winning, losing, draw):
    pid = pl.program_id(0)
    logits = logits_ref[...].astype(jnp.float32)          # (TB, C), promoted in VMEM
    aux = aux_ref[...]                                     # (TB, 2) int32
    tb, c = logits.shape

    targets = aux[:, 0:1]                                  # (TB, 1) int32
    states = aux[:, 1:2]                                   # (TB, 1) int32

    # Rows past the true batch size (partial last tile) are masked out below,
    # AFTER per-row math and BEFORE any cross-row reduction.
    row = jax.lax.broadcasted_iota(jnp.int32, (tb, 1), 0)
    valid = (pid * tb + row) < batch                       # (TB, 1) bool

    col = jax.lax.broadcasted_iota(jnp.int32, (tb, c), 1)
    ones_col = jnp.ones((c, 1), jnp.float32)

    # Target-logit gather from the RAW logits; cross-lane sum on the MXU.
    tgt_masked = jnp.where(col == targets, logits, 0.0)    # (TB, C)
    tgt_raw = jnp.dot(tgt_masked, ones_col,
                      preferred_element_type=jnp.float32)  # (TB, 1)

    # Numerically stable logsumexp; `logits - m` has exactly one consumer (exp),
    # so no (TB, C) shifted temp is kept alive.
    m = jnp.max(logits, axis=-1, keepdims=True)            # (TB, 1), XLU
    p = jnp.exp(logits - m)                                # (TB, C), EUP
    sum_exp = jnp.dot(p, ones_col,
                      preferred_element_type=jnp.float32)  # (TB, 1), MXU
    ce_row = m + jnp.log(sum_exp) - tgt_raw                # (TB, 1)

    # Reward mapping (zeros_like semantics outside {-1, 0, 1}).
    reward_row = jnp.where(states == 1, jnp.float32(winning),
                  jnp.where(states == -1, jnp.float32(losing),
                   jnp.where(states == 0, jnp.float32(draw),
                             jnp.float32(0.0))))           # (TB, 1)

    ce_sum = jnp.sum(jnp.where(valid, ce_row, 0.0))
    rw_sum = jnp.sum(jnp.where(valid, reward_row, 0.0))

    # Lane-dense (8, 128) partial-sum tile: [0, 0] = ce_sum, [0, 1] = reward_sum.
    sub = jax.lax.broadcasted_iota(jnp.int32, (8, 128), 0)
    lane = jax.lax.broadcasted_iota(jnp.int32, (8, 128), 1)
    out_ref[...] = jnp.where(
        sub == 0,
        jnp.where(lane == 0, ce_sum, jnp.where(lane == 1, rw_sum, 0.0)),
        0.0)


def custom_loss(predicted_moves, actual_moves, game_states,
                original_loss_weight=1.0, winning_reward=1.0,
                losing_reward=-1.0, draw_reward=0.0, block_rows=None):
    B, C = predicted_moves.shape
    aux = jnp.stack([actual_moves.reshape(B).astype(jnp.int32),
                     game_states.reshape(B).astype(jnp.int32)], axis=-1)  # (B, 2)

    itemsize = jnp.dtype(predicted_moves.dtype).itemsize
    vmem_limit = _vmem_budget_bytes()

    if block_rows is None:
        # Real per-row VMEM footprint:
        #   logits tile (lane-padded to 128) x2 double-buffered,
        #   ~4 live f32 (TB, C) internal temporaries (promoted logits, masked
        #   gather, exp, iota),
        #   (TB, 2) int32 aux tile lane-padded to 128 lanes x2 double-buffered.
        c_padded = _round_up(max(C, 1), 128)
        bytes_per_row = (2 * itemsize * c_padded        # logits, double buffer
                         + 4 * 4 * c_padded             # f32 temporaries
                         + 2 * 4 * 128)                 # aux int32, double buffer
        tile_budget = int(vmem_limit * 0.8)             # headroom inside the limit
        rows_fit = max(8, (tile_budget // bytes_per_row) // 8 * 8)
        block_rows = min(_round_up(B, 8), rows_fit)
        if B > 8:
            # Keep >= 2 roughly even tiles so both v7x TensorCores get work.
            block_rows = min(block_rows, _round_up(pl.cdiv(B, 2), 8))
    block_rows = max(8, (block_rows // 8) * 8)
    num_tiles = pl.cdiv(B, block_rows)

    kernel = functools.partial(
        _custom_loss_kernel,
        batch=B,
        winning=float(winning_reward),
        losing=float(losing_reward),
        draw=float(draw_reward),
    )

    cost = pl.CostEstimate(
        flops=8 * B * C,
        transcendentals=B * C + B,
        bytes_accessed=B * C * itemsize + 2 * B * 4 + num_tiles * 8 * 128 * 4,
    )

    partials = pl.pallas_call(
        kernel,
        out_shape=jax.ShapeDtypeStruct((num_tiles * 8, 128), jnp.float32),
        grid_spec=pltpu.PrefetchScalarGridSpec(
            num_scalar_prefetch=0,
            grid=(num_tiles,),
            in_specs=[
                pl.BlockSpec((block_rows, C), lambda i: (i, 0)),  # native dtype DMA
                pl.BlockSpec((block_rows, 2), lambda i: (i, 0)),  # targets|states
            ],
            out_specs=pl.BlockSpec((8, 128), lambda i: (i, 0)),
        ),
        compiler_params=pltpu.CompilerParams(
            dimension_semantics=("parallel",),
            vmem_limit_bytes=vmem_limit,
        ),
        cost_estimate=cost,
    )(predicted_moves, aux)

    ce_total = jnp.sum(partials[:, 0])
    rw_total = jnp.sum(partials[:, 1])
    # w * mean_ce - mean_reward == (w * ce_total - rw_total) / B
    return (jnp.float32(original_loss_weight) * ce_total - rw_total) * jnp.float32(1.0 / B)


def _reference_loss(predicted, actual, states, w=1.0, win=1.0, lose=-1.0, draw=0.0):
    logp = jax.nn.log_softmax(predicted.astype(jnp.float32), axis=-1)
    ce = -jnp.take_along_axis(logp, actual[:, None].astype(jnp.int32), axis=-1)
    original_loss = jnp.mean(ce)
    reward = jnp.where(states == 1, win,
              jnp.where(states == -1, lose,
               jnp.where(states == 0, draw, 0.0))).astype(jnp.float32)
    return w * original_loss - jnp.mean(reward)


if __name__ == "__main__":
    key = jax.random.PRNGKey(0)
    k1, k2, k3 = jax.random.split(key, 3)

    # B deliberately not a multiple of the 8-row tile to exercise edge masking.
    B, C = 12, 32
    predicted_moves = jax.random.normal(k1, (B, C), dtype=jnp.float32)
    actual_moves = jax.random.randint(k2, (B,), 0, C, dtype=jnp.int32)
    game_states = jax.random.randint(k3, (B,), -1, 2, dtype=jnp.int32)  # {-1,0,1}

    loss = custom_loss(predicted_moves, actual_moves, game_states)
    loss = jax.block_until_ready(loss)

    ref = _reference_loss(predicted_moves, actual_moves, game_states)
    assert jnp.allclose(loss, ref, atol=1e-5, rtol=1e-5), (loss, ref)

    print("KERNEL_OK")
</pallas_src>

<mosaic_0001>
module attributes {stable_mosaic.version = 11 : i64} {
  func.func @_custom_loss_kernel(%arg0: i32, %arg1: memref<8x32xf32, #tpu.memory_space<vmem>>, %arg2: memref<8x2xi32, #tpu.memory_space<vmem>>, %arg3: memref<8x128xf32, #tpu.memory_space<vmem>>) attributes {dimension_semantics = [#tpu.dimension_semantics<parallel>], iteration_bounds = array<i64: 2>, scalar_prefetch = 0 : i64, scratch_operands = 0 : i64, tpu.core_type = #tpu.core_type<tc>, window_params = [{transform_indices = @transform_0, window_bounds = array<i64: 8, 32>}, {transform_indices = @transform_1, window_bounds = array<i64: 8, 2>}, {transform_indices = @transform_2, window_bounds = array<i64: 8, 128>}]} {
    %c0 = arith.constant 0 : index
    %c0_0 = arith.constant 0 : index
    %0 = vector.load %arg1[%c0, %c0_0] : memref<8x32xf32, #tpu.memory_space<vmem>>, vector<8x32xf32>
    %c0_1 = arith.constant 0 : index
    %c0_2 = arith.constant 0 : index
    %1 = vector.load %arg2[%c0_1, %c0_2] : memref<8x2xi32, #tpu.memory_space<vmem>>, vector<8x2xi32>
    %2 = vector.extract_strided_slice %1 {offsets = [0, 0], sizes = [8, 1], strides = [1, 1]} : vector<8x2xi32> to vector<8x1xi32>
    %3 = vector.extract_strided_slice %1 {offsets = [0, 1], sizes = [8, 1], strides = [1, 1]} : vector<8x2xi32> to vector<8x1xi32>
    %4 = tpu.iota {dimensions = array<i32: 0>} : vector<8x1xi32>
    %c8_i32 = arith.constant 8 : i32
    %5 = arith.muli %arg0, %c8_i32 : i32
    %6 = vector.broadcast %5 : i32 to vector<8x1xi32>
    %7 = arith.addi %6, %4 : vector<8x1xi32>
    %c12_i32 = arith.constant 12 : i32
    %8 = vector.broadcast %c12_i32 : i32 to vector<8x1xi32>
    %9 = arith.cmpi slt, %7, %8 : vector<8x1xi32>
    %10 = tpu.iota {dimensions = array<i32: 1>} : vector<8x32xi32>
    %cst = arith.constant 1.000000e+00 : f32
    %11 = vector.broadcast %cst : f32 to vector<32x1xf32>
    %12 = vector.broadcast %2 : vector<8x1xi32> to vector<8x32xi32>
    %13 = arith.cmpi eq, %10, %12 : vector<8x32xi32>
    %cst_3 = arith.constant 0.000000e+00 : f32
    %14 = vector.broadcast %cst_3 : f32 to vector<8x32xf32>
    %15 = arith.select %13, %0, %14 : vector<8x32xi1>, vector<8x32xf32>
    %cst_4 = arith.constant dense<0.000000e+00> : vector<8x1xf32>
    %16 = tpu.matmul %15, %11, %cst_4 {dimension_numbers = #tpu.dot_dimension_numbers<[1], [0], [0], [1], [0, 0, 1, 1], [], []>} : vector<8x32xf32>, vector<32x1xf32>, vector<8x1xf32> -> vector<8x1xf32>
    %cst_5 = arith.constant dense<0xFF800000> : vector<8xf32>
    %17 = vector.multi_reduction <maximumf>, %0, %cst_5 [1] : vector<8x32xf32> to vector<8xf32>
    %18 = vector.shape_cast %17 : vector<8xf32> to vector<8x1xf32>
    %19 = vector.broadcast %18 : vector<8x1xf32> to vector<8x32xf32>
    %20 = arith.subf %0, %19 : vector<8x32xf32>
    %21 = math.exp %20 : vector<8x32xf32>
    %cst_6 = arith.constant dense<0.000000e+00> : vector<8x1xf32>
    %22 = tpu.matmul %21, %11, %cst_6 {dimension_numbers = #tpu.dot_dimension_numbers<[1], [0], [0], [1], [0, 0, 1, 1], [], []>} : vector<8x32xf32>, vector<32x1xf32>, vector<8x1xf32> -> vector<8x1xf32>
    %23 = math.log %22 : vector<8x1xf32>
    %24 = arith.addf %18, %23 : vector<8x1xf32>
    %25 = arith.subf %24, %16 : vector<8x1xf32>
    %c1_i32 = arith.constant 1 : i32
    %26 = vector.broadcast %c1_i32 : i32 to vector<8x1xi32>
    %27 = arith.cmpi eq, %3, %26 : vector<8x1xi32>
    %c-1_i32 = arith.constant -1 : i32
    %28 = vector.broadcast %c-1_i32 : i32 to vector<8x1xi32>
    %29 = arith.cmpi eq, %3, %28 : vector<8x1xi32>
    %c0_i32 = arith.constant 0 : i32
    %30 = vector.broadcast %c0_i32 : i32 to vector<8x1xi32>
    %31 = arith.cmpi eq, %3, %30 : vector<8x1xi32>
    %cst_7 = arith.constant 0.000000e+00 : f32
    %cst_8 = arith.constant 0.000000e+00 : f32
    %32 = vector.broadcast %cst_7 : f32 to vector<8x1xf32>
    %33 = vector.broadcast %cst_8 : f32 to vector<8x1xf32>
    %34 = arith.select %31, %32, %33 : vector<8x1xi1>, vector<8x1xf32>
    %cst_9 = arith.constant -1.000000e+00 : f32
    %35 = vector.broadcast %cst_9 : f32 to vector<8x1xf32>
    %36 = arith.select %29, %35, %34 : vector<8x1xi1>, vector<8x1xf32>
    %cst_10 = arith.constant 1.000000e+00 : f32
    %37 = vector.broadcast %cst_10 : f32 to vector<8x1xf32>
    %38 = arith.select %27, %37, %36 : vector<8x1xi1>, vector<8x1xf32>
    %cst_11 = arith.constant 0.000000e+00 : f32
    %39 = vector.broadcast %cst_11 : f32 to vector<8x1xf32>
    %40 = arith.select %9, %25, %39 : vector<8x1xi1>, vector<8x1xf32>
    %41 = vector.shape_cast %40 : vector<8x1xf32> to vector<1x8x1xf32>
    %cst_12 = arith.constant dense<0.000000e+00> : vector<1xf32>
    %42 = vector.multi_reduction <add>, %41, %cst_12 [1, 2] : vector<1x8x1xf32> to vector<1xf32>
    %43 = vector.shape_cast %42 : vector<1xf32> to vector<1x1x1xf32>
    %44 = vector.extract %43[0, 0, 0] : f32 from vector<1x1x1xf32>
    %cst_13 = arith.constant 0.000000e+00 : f32
    %45 = vector.broadcast %cst_13 : f32 to vector<8x1xf32>
    %46 = arith.select %9, %38, %45 : vector<8x1xi1>, vector<8x1xf32>
    %47 = vector.shape_cast %46 : vector<8x1xf32> to vector<1x8x1xf32>
    %cst_14 = arith.constant dense<0.000000e+00> : vector<1xf32>
    %48 = vector.multi_reduction <add>, %47, %cst_14 [1, 2] : vector<1x8x1xf32> to vector<1xf32>
    %49 = vector.shape_cast %48 : vector<1xf32> to vector<1x1x1xf32>
    %50 = vector.extract %49[0, 0, 0] : f32 from vector<1x1x1xf32>
    %51 = tpu.iota {dimensions = array<i32: 0>} : vector<8x128xi32>
    %52 = tpu.iota {dimensions = array<i32: 1>} : vector<8x128xi32>
    %c0_i32_15 = arith.constant 0 : i32
    %53 = vector.broadcast %c0_i32_15 : i32 to vector<8x128xi32>
    %54 = arith.cmpi eq, %51, %53 : vector<8x128xi32>
    %c0_i32_16 = arith.constant 0 : i32
    %55 = vector.broadcast %c0_i32_16 : i32 to vector<8x128xi32>
    %56 = arith.cmpi eq, %52, %55 : vector<8x128xi32>
    %c1_i32_17 = arith.constant 1 : i32
    %57 = vector.broadcast %c1_i32_17 : i32 to vector<8x128xi32>
    %58 = arith.cmpi eq, %52, %57 : vector<8x128xi32>
    %cst_18 = arith.constant 0.000000e+00 : f32
    %59 = vector.broadcast %50 : f32 to vector<8x128xf32>
    %60 = vector.broadcast %cst_18 : f32 to vector<8x128xf32>
    %61 = arith.select %58, %59, %60 : vector<8x128xi1>, vector<8x128xf32>
    %62 = vector.broadcast %44 : f32 to vector<8x128xf32>
    %63 = arith.select %56, %62, %61 : vector<8x128xi1>, vector<8x128xf32>
    %cst_19 = arith.constant 0.000000e+00 : f32
    %64 = vector.broadcast %cst_19 : f32 to vector<8x128xf32>
    %65 = arith.select %54, %63, %64 : vector<8x128xi1>, vector<8x128xf32>
    %c0_20 = arith.constant 0 : index
    %c0_21 = arith.constant 0 : index
    %66 = vector.load %arg3[%c0_20, %c0_21] : memref<8x128xf32, #tpu.memory_space<vmem>>, vector<8x128xf32>
    tpu.vector_store %arg3[%c0_20, %c0_21], %65 {strides = array<i32>} : memref<8x128xf32, #tpu.memory_space<vmem>>, vector<8x128xf32>,
    return
  }
  func.func @transform_0(%arg0: i32) -> (i32, i32) {
    %c0_i32 = arith.constant 0 : i32
    %c0_i32_0 = arith.constant 0 : i32
    return %arg0, %c0_i32 : i32, i32
  }
  func.func @transform_1(%arg0: i32) -> (i32, i32) {
    %c0_i32 = arith.constant 0 : i32
    %c0_i32_0 = arith.constant 0 : i32
    return %arg0, %c0_i32 : i32, i32
  }
  func.func @transform_2(%arg0: i32) -> (i32, i32) {
    %c0_i32 = arith.constant 0 : i32
    %c0_i32_0 = arith.constant 0 : i32
    return %arg0, %c0_i32 : i32, i32
  }
}

</mosaic_0001>

<llo_original>
// kernel: tpu_custom_call.1
$region0: #{tpu_custom_call.1}
  #allocation0 [shape = 'u32[]', space=smem, size = 0x4, offset = 0x4, fixed_abs, tag = 'smem constant byte address 0x4 - core index']
  #allocation1 [shape = 'u32[72,128]{1,0:T(1,128)}', space=vmem, size = 0x9000, scoped, tag = 'internal scratch']
  %s0 = inlined_call_operand.vmem [shape: f32[12,32], index: 0, kind: input, shape index: {}]
  %s1 = inlined_call_operand.vmem [shape: s32[12,2], index: 1, kind: input, shape index: {}]
  %s2 = inlined_call_operand.hbm [shape: f32[16,128], index: 2, kind: output, shape index: {}]
  %s3 = sld [smem:[#allocation0]]
  $region41: #{tpu_custom_call.1} parent=0
    _
  %s5 = ssub.s32 1, %s3
  %s6 = scalar_select 0, %s5, %s3
  $region1: #{tpu_custom_call.1} parent=0
    #allocation2 [shape = 'u8[8192]{0}', space=vmem, size = 0x2000, scoped, tag = 'output window, operand 0']
    #allocation3 [shape = 's32[2]{0}', space=sflag, size = 0x8, scoped, tag = 'scoped memory for tpu_custom_call.1']
    %7 = vsyncpa [#allocation3], 0
    %s8 = scalar_lea.sflag [#allocation3], 1
    %9 = vsyncpa %s8, 0
    loop: start=0, step=1, limit=4
    $region2: #{tpu_custom_call.1} parent=1 // loop_pre_header
      _
    $region3: #{tpu_custom_call.1} parent=1 // loop_header
      %s11 = sphi 0, %s15
      %p12 = scmp.ge.s32.totalorder %s11, 4
      %s21 = sphi 0, %s23
      %s24 = sphi 0, %s21
      %s25 = sphi 0, %s24
      %s41 = sphi 0, %s25
      %s47 = sphi 0, %s49
      %s50 = sphi 0, %s47
      %s51 = sphi 0, %s50
      %s67 = sphi 0, %s51
      %s73 = sphi 0, %s75
      %s76 = sphi 0, %s73
      %s77 = sphi 0, %s76
      %s93 = sphi 0, %s77
    $region4: #{tpu_custom_call.1} parent=1 // loop_header_branch
      %14 = sbr.rel (%p12) target = $region8
    $region5: #{tpu_custom_call.1} parent=1 // loop_body
      %s16 = ssub.s32 %s11, 1
      %s17 = ssub.s32 %s11, 2
      %s18 = sadd.s32 %s11, 1
      %s19 = ssub.s32 %s11, %s18
      %p20 = scmp.eq.s32.totalorder %s19, 0
      %s22 = sadd.s32 %s21, 1
      %s23 = scalar_select %p20, %s21, %s22
      %p26 = pneg %p20
      %p27 = scmp.eq.s32.totalorder %s11, 1
      %p28 = por %p26, %p27
      %p29 = scmp.ne.s32.totalorder %s21, %s24
      %p30 = scmp.eq.s32.totalorder %s11, 0
      %p31 = por %p29, %p30
      %p32 = scmp.ne.s32.totalorder %s21, %s24
      %p33 = scmp.eq.s32.totalorder %s16, 1
      %p34 = por %p32, %p33
      %p35 = scmp.ne.s32.totalorder %s24, %s25
      %p36 = scmp.eq.s32.totalorder %s16, 0
      %p37 = por %p35, %p36
      %p38 = scmp.ne.s32.totalorder %s24, %s25
      %p39 = scmp.eq.s32.totalorder %s17, 1
      %p40 = por %p38, %p39
      %p42 = scmp.ne.s32.totalorder %s25, %s41
      %p43 = scmp.eq.s32.totalorder %s17, 0
      %p44 = por %p42, %p43
      %s45 = ssub.s32 %s11, %s18
      %p46 = scmp.eq.s32.totalorder %s45, 0
      %s48 = sadd.s32 %s47, 1
      %s49 = scalar_select %p46, %s47, %s48
      %p52 = pneg %p46
      %p53 = scmp.eq.s32.totalorder %s11, 1
      %p54 = por %p52, %p53
      %p55 = scmp.ne.s32.totalorder %s47, %s50
      %p56 = scmp.eq.s32.totalorder %s11, 0
      %p57 = por %p55, %p56
      %p58 = scmp.ne.s32.totalorder %s47, %s50
      %p59 = scmp.eq.s32.totalorder %s16, 1
      %p60 = por %p58, %p59
      %p61 = scmp.ne.s32.totalorder %s50, %s51
      %p62 = scmp.eq.s32.totalorder %s16, 0
      %p63 = por %p61, %p62
      %p64 = scmp.ne.s32.totalorder %s50, %s51
      %p65 = scmp.eq.s32.totalorder %s17, 1
      %p66 = por %p64, %p65
      %p68 = scmp.ne.s32.totalorder %s51, %s67
      %p69 = scmp.eq.s32.totalorder %s17, 0
      %p70 = por %p68, %p69
      %s71 = ssub.s32 %s11, %s18
      %p72 = scmp.eq.s32.totalorder %s71, 0
      %s74 = sadd.s32 %s73, 1
      %s75 = scalar_select %p72, %s73, %s74
      %p78 = pneg %p72
      %p79 = scmp.eq.s32.totalorder %s11, 1
      %p80 = por %p78, %p79
      %p81 = scmp.ne.s32.totalorder %s73, %s76
      %p82 = scmp.eq.s32.totalorder %s11, 0
      %p83 = por %p81, %p82
      %p84 = scmp.ne.s32.totalorder %s73, %s76
      %p85 = scmp.eq.s32.totalorder %s16, 1
      %p86 = por %p84, %p85
      %p87 = scmp.ne.s32.totalorder %s76, %s77
      %p88 = scmp.eq.s32.totalorder %s16, 0
      %p89 = por %p87, %p88
      %p90 = scmp.ne.s32.totalorder %s76, %s77
      %p91 = scmp.eq.s32.totalorder %s17, 1
      %p92 = por %p90, %p91
      %p94 = scmp.ne.s32.totalorder %s77, %s93
      %p95 = scmp.eq.s32.totalorder %s17, 0
      %p96 = por %p94, %p95
      %p97 = scmp.le.s32.totalorder 1, %s11
      %p98 = scmp.lt.s32.totalorder %s11, 3
      %p99 = pnand %p97, %p98
      %p100 = pneg %p99
      // Predicated region
      $region9: #{tpu_custom_call.1} parent=5 // pred_check
        _
      $region10: #{tpu_custom_call.1} parent=5 // pred_check_branch
        %102 = sbr.rel (%p99) target = $region12
      $region11: #{tpu_custom_call.1} parent=5 // pred_region
        %s103 = ssub.s32 %s11, 1
      $region12: #{tpu_custom_call.1} parent=5 // pred_fallthru
        _
      %p104 = scmp.lt.s32.totalorder %s11, 2
      // Predicated region
      $region13: #{tpu_custom_call.1} parent=5 // pred_check
        %p105 = pneg %p104
      $region14: #{tpu_custom_call.1} parent=5 // pred_check_branch
        %107 = sbr.rel (%p105) target = $region16
      $region15: #{tpu_custom_call.1} parent=5 // pred_region
        // Predicated region
        $region17: #{tpu_custom_call.1} parent=15 // pred_check
          %p108 = pneg %p31
        $region18: #{tpu_custom_call.1} parent=15 // pred_check_branch
          %110 = sbr.rel (%p108) target = $region20
        $region19: #{tpu_custom_call.1} parent=15 // pred_region
          %p111 = scmp.lt.s32.totalorder %s11, 1
          %s112 = scalar_select %p111, %s11, 1
          %s113 = smul.addr %s112, 8
          %s114 = scalar_lea.vmem %s0, %s113
        $region20: #{tpu_custom_call.1} parent=15 // pred_fallthru
          _
        // Predicated region
        $region21: #{tpu_custom_call.1} parent=15 // pred_check
          %p115 = pneg %p57
        $region22: #{tpu_custom_call.1} parent=15 // pred_check_branch
          %117 = sbr.rel (%p115) target = $region24
        $region23: #{tpu_custom_call.1} parent=15 // pred_region
          %p118 = scmp.lt.s32.totalorder %s11, 1
          %s119 = scalar_select %p118, %s11, 1
          %s120 = smul.addr %s119, 8
          %s121 = scalar_lea.vmem %s1, %s120
        $region24: #{tpu_custom_call.1} parent=15 // pred_fallthru
          _
      $region16: #{tpu_custom_call.1} parent=5 // pred_fallthru
        _
      %p122 = scmp.le.s32.totalorder 1, %s11
      %p123 = scmp.lt.s32.totalorder %s11, 3
      %p124 = pnand %p122, %p123
      %p125 = pneg %p124
      // Predicated region
      $region25: #{tpu_custom_call.1} parent=5 // pred_check
        _
      $region26: #{tpu_custom_call.1} parent=5 // pred_check_branch
        %127 = sbr.rel (%p124) target = $region28
      $region27: #{tpu_custom_call.1} parent=5 // pred_region
        %s128 = ssub.s32 %s11, 1
        %p129 = scmp.lt.s32.totalorder %s16, 1
        %s130 = scalar_select %p129, %s16, 1
        %s131 = smul.addr %s130, 8
        %s132 = scalar_lea.vmem %s0, %s131
        %p133 = pneg %p37
        %p134 = pneg %p34
        %p135 = scmp.lt.s32.totalorder %s16, 1
        %s136 = scalar_select %p135, %s16, 1
        %s137 = smul.addr %s136, 8
        %s138 = scalar_lea.vmem %s1, %s137
        %p139 = pneg %p63
        %p140 = pneg %p60
        %p141 = pneg %p89
        %p142 = pneg %p86
        %s143 = sand.u32 %s76, 1
        %s144 = scalar_lea.sflag [#allocation3], %s143
        %s145 = sand.u32 %s76, 1
        %s146 = smul.addr %s145, 8
        %s147 = scalar_lea.vmem [#allocation2], %s146
        %p148 = scmp.lt.s32.totalorder %s16, 1
        %s149 = scalar_select %p148, %s16, 1
        %s150 = smul.addr %s149, 8
        %s151 = scalar_lea.vmem %s0, %s150
        %p152 = scmp.lt.s32.totalorder %s16, 1
        %s153 = scalar_select %p152, %s16, 1
        %s154 = smul.addr %s153, 8
        %s155 = scalar_lea.vmem %s1, %s154
        %v156 = vld [vmem:[%s151] sm:$0xff]
        %v157 = vld [vmem:[%s155] sm:$0xff]
        %v158 = vlaneseq
        %v159 = vshrl.u32 %v158, 7
        %s160 = smul.u32 %s16, 8
        %v161 = vstv %s160
        %v162 = vadd.s32 %v161, %v159
        %vm163 = vcmp.lt.s32.totalorder %v162, 12
        %v164 = vlaneseq
        %v165 = vand.u32 %v164, 127
        %166 = vset.pattern.permute.xlu0 0
        %167 = vperm.xlu0 %166, %v157
        %v168 = vpop.permute.xlu0 %167
        %vm169 = vcmp.eq.s32.totalorder %v165, %v168
        %v170 = vsel %vm169, %v156, 0.0
        %vm171 = vcmask 261120
        %v173 = vsel %vm171, %v170, 0
        %175 = vmatpush.msra.mxu0 0.0
        %176 = vmatpush.msra.mxu0 0.0
        %177 = vmatpush.msra.mxu0 0.0
        %178 = vmatpush.msra.mxu0 0.0
        %179 = vmatpush.msra.mxu0 0.0
        %180 = vmatpush.msra.mxu0 0.0
        %181 = vmatpush.msra.mxu0 0.0
        %182 = vmatpush.msra.mxu0 0.0
        %183 = vmatpush.msra.mxu0 0.0
        %184 = vmatpush.msra.mxu0 0.0
        %185 = vmatpush.msra.mxu0 0.0
        %186 = vmatpush.msra.mxu0 0.0
        %187 = vmatpush.msra.mxu0 1.0
        %188 = vmatpush.msra.mxu0 1.0
        %189 = vmatpush.msra.mxu0 1.0
        %190 = vmatpush.msra.mxu0 1.0
        %191 = vmatmul.f32.gmra.mxu0 %v173
        %v192 = vpop.f32.mrf.mxu0
        %v193 = vadd.f32 0.0, %v192
        %194 = vdwg.mxu0
        %v195 = vsel %vm171, %v156, -inf
        %196 = vmax.xlane.f32.xlu0 %v195
        %v197 = vpop.xlane.xlu0 %196
        %v198 = vsub.f32 %v156, %v197
        %v199 = vmul.f32 %v198, 1.442695
        %v200 = vpow.pop %v199
        %v202 = vsel %vm171, %v200, 0
        %204 = vmatpush.msra.mxu0 0.0
        %205 = vmatpush.msra.mxu0 0.0
        %206 = vmatpush.msra.mxu0 0.0
        %207 = vmatpush.msra.mxu0 0.0
        %208 = vmatpush.msra.mxu0 0.0
        %209 = vmatpush.msra.mxu0 0.0
        %210 = vmatpush.msra.mxu0 0.0
        %211 = vmatpush.msra.mxu0 0.0
        %212 = vmatpush.msra.mxu0 0.0
        %213 = vmatpush.msra.mxu0 0.0
        %214 = vmatpush.msra.mxu0 0.0
        %215 = vmatpush.msra.mxu0 0.0
        %216 = vmatpush.msra.mxu0 1.0
        %217 = vmatpush.msra.mxu0 1.0
        %218 = vmatpush.msra.mxu0 1.0
        %219 = vmatpush.msra.mxu0 1.0
        %220 = vmatmul.f32.gmra.mxu0 %v202
        %v221 = vpop.f32.mrf.mxu0
        %v222 = vadd.f32 0.0, %v221
        %223 = vdwg.mxu0
        %v224 = vlog2.pop %v222
        %v225 = vmul.f32 %v224, 0.6931472
        %v226 = vadd.f32 %v197, %v225
        %v227 = vsub.f32 %v226, %v193
        %vm228 = vcmp.eq.s32.totalorder %v157, 1
        %vm229 = vcmp.eq.s32.totalorder %v157, 4294967295
        %v230 = vsel %vm229, -1.0, 0.0
        %v231 = vsel %vm228, 1.0, %v230
        %v232 = vsel %vm163, %v227, 0.0
        %vm233 = vcmask 7168
        %v234 = vsel %vm233, %v232, 0.0
        %235 = vadd.xlane.f32.xlu0 %v234
        %v236 = vpop.xlane.xlu0 %235
        %v237 = vrot.slane %v236, 4
        %v238 = vadd.f32 %v236, %v237
        %v239 = vrot.slane %v238, 2
        %v240 = vadd.f32 %v238, %v239
        %v241 = vrot.slane %v240, 1
        %v242 = vadd.f32 %v240, %v241
        %s243 = vtos %v242
        %v244 = vsel %vm163, %v231, 0.0
        %246 = vrot.lane.b32.xlu0 %v244, 127
        %v247 = vpop.permute.xlu0 %246
        %v249 = vsel %vm233, %v247, 0.0
        %250 = vadd.xlane.f32.xlu0 %v249
        %v251 = vpop.xlane.xlu0 %250
        %v252 = vrot.slane %v251, 4
        %v253 = vadd.f32 %v251, %v252
        %v254 = vrot.slane %v253, 2
        %v255 = vadd.f32 %v253, %v254
        %v256 = vrot.slane %v255, 1
        %v257 = vadd.f32 %v255, %v256
        %s258 = vtos %v257
        %vm259 = vcmp.eq.s32.totalorder %v159, 0
        %vm260 = vcmp.eq.s32.totalorder %v165, 0
        %vm261 = vcmp.eq.s32.totalorder %v165, 1
        %v262 = vstv %s258
        %v263 = vsel %vm261, %v262, 0.0
        %v264 = vstv %s243
        %v265 = vsel %vm260, %v264, %v263
        %v266 = vsel %vm259, %v265, 0.0
        %267 = vst [vmem:[%s147] sm:$0xff] %v266
        %s268 = sand.u32 %s76, 1
        %s269 = scalar_lea.sflag [#allocation3], %s268
        %s270 = sand.u32 %s76, 1
        %s271 = smul.addr %s270, 8
        %s272 = scalar_lea.vmem [#allocation2], %s271
        // Predicated region
        $region29: #{tpu_custom_call.1} parent=27 // pred_check
          %p273 = pneg %p86
        $region30: #{tpu_custom_call.1} parent=27 // pred_check_branch
          %275 = sbr.rel (%p273) target = $region32
        $region31: #{tpu_custom_call.1} parent=27 // pred_region
          %277 = vsyncadd %s269, 0
          %s278 = smul.addr %s16, 8
          %s279 = scalar_lea.hbm %s2, %s278
          %s281 = sshll.u32 %s272, 4
          %s282 = int_to_ptr.vmem [resolvable:$true] %s281
          %s283 = sshll.u32 %s279, 4
          %s284 = int_to_ptr.hbm [resolvable:$true] %s283
          %286 = dma.vmem_to_hbm [thread:$0]  %s282, 128, %s284, %s269
        $region32: #{tpu_custom_call.1} parent=27 // pred_fallthru
          _
      $region28: #{tpu_custom_call.1} parent=5 // pred_fallthru
        _
      %p287 = scmp.le.s32.totalorder 2, %s11
      // Predicated region
      $region33: #{tpu_custom_call.1} parent=5 // pred_check
        %p288 = pneg %p287
      $region34: #{tpu_custom_call.1} parent=5 // pred_check_branch
        %290 = sbr.rel (%p288) target = $region36
      $region35: #{tpu_custom_call.1} parent=5 // pred_region
        %s291 = ssub.s32 %s11, 2
        // Predicated region
        $region37: #{tpu_custom_call.1} parent=35 // pred_check
          %p292 = pneg %p92
        $region38: #{tpu_custom_call.1} parent=35 // pred_check_branch
          %294 = sbr.rel (%p292) target = $region40
        $region39: #{tpu_custom_call.1} parent=35 // pred_region
          %s295 = sand.u32 %s77, 1
          %s296 = scalar_lea.sflag [#allocation3], %s295
          %s297 = sand.u32 %s77, 1
          %s298 = smul.addr %s297, 8
          %s299 = scalar_lea.vmem [#allocation2], %s298
          %301 = dma.done %s296, 128
        $region40: #{tpu_custom_call.1} parent=35 // pred_fallthru
          _
      $region36: #{tpu_custom_call.1} parent=5 // pred_fallthru
        _
    $region6: #{tpu_custom_call.1} parent=1 // loop_footer
      %s15 = sadd.s32 1, %s11
    $region7: #{tpu_custom_call.1} parent=1 // loop_footer_branch
      %10 = sbr.rel target = $region3
    $region8: #{tpu_custom_call.1} parent=1 // loop_exit
      _
    %302 = vsyncpa [#allocation3], 1
    %s303 = scalar_lea.sflag [#allocation3], 1
    %304 = vsyncpa %s303, 1

</llo_original>
